<compile_context>
chip_gen: v7x
topology: tpu7x:2x2x1
jax: 0.10.0
libtpu: 0.0.40
codegen_flags: <defaults>
</compile_context>

<pallas_src>
import jax
import jax.numpy as jnp
from jax.experimental import pallas as pl
from jax.experimental.pallas import tpu as pltpu

_LANE = 128
_SUBLANE = 8


def _round_up(x, m):
    return ((x + m - 1) // m) * m


def _vae_encode_kernel(x_ref, w_enc_ref, b_enc_ref, w_heads_ref, b_heads_ref, out_ref):
    # Encoder: Linear + LeakyReLU (negative_slope = 0.01, torch default).
    # MXU accumulates in f32; elementwise (bias add, LeakyReLU) stays f32
    # (v5e's VPU has no bf16, and VALU has plenty of slack here anyway).
    x = x_ref[...]
    h = jnp.dot(x, w_enc_ref[...], preferred_element_type=jnp.float32)
    h = h + b_enc_ref[...]
    h = jnp.where(h > 0, h, 0.01 * h)

    # Fused [mu | log_var] head: one MXU push, one (un-padded) output store.
    out = jnp.dot(h.astype(w_heads_ref.dtype), w_heads_ref[...],
                  preferred_element_type=jnp.float32)
    out_ref[...] = out + b_heads_ref[...]


def vae_forward(x, params, *, block_rows=1024):
    """Pallas implementation of VAE.forward. Returns ([mu, log_var], prob)."""
    n, d_in = x.shape
    latent_dim = params["latent_dim"]
    w_enc, b_enc = params["w_enc"], params["b_enc"]
    w_heads, b_heads = params["w_heads"], params["b_heads"]
    hp = w_enc.shape[1]        # hidden_dim zero-padded to a lane multiple (128)
    lo = w_heads.shape[1]      # 2*latent_dim, un-padded (dominant output stream)

    # Cast x in the wrapper so a bf16 parameter set actually halves the HBM
    # read bytes (no-op for the default f32 params).
    if x.dtype != w_enc.dtype:
        x = x.astype(w_enc.dtype)

    # Row tile: multiple of the 8-sublane granule, capped at block_rows and at
    # ceil(n/2) so the grid has >= 2 steps whenever n > 8 (keeps both v7x
    # TensorCores busy via the "parallel" axis).  At tm=1024 the double-buffered
    # x/out tiles plus resident weights are still only a few MiB of VMEM.
    half_rows = _round_up(-(-n // 2), _SUBLANE)
    tm = max(_SUBLANE, min(block_rows, half_rows))
    grid = (pl.cdiv(n, tm),)   # ragged last block handled by Pallas masking

    out = pl.pallas_call(
        _vae_encode_kernel,
        out_shape=jax.ShapeDtypeStruct((n, lo), jnp.float32),
        grid=grid,
        in_specs=[
            pl.BlockSpec((tm, d_in), lambda i: (i, 0)),    # x: row-tiled, pipelined
            pl.BlockSpec((d_in, hp), lambda i: (0, 0)),    # weights: VMEM-resident
            pl.BlockSpec((1, hp), lambda i: (0, 0)),
            pl.BlockSpec((hp, lo), lambda i: (0, 0)),
            pl.BlockSpec((1, lo), lambda i: (0, 0)),
        ],
        out_specs=pl.BlockSpec((tm, lo), lambda i: (i, 0)),
        compiler_params=pltpu.CompilerParams(
            dimension_semantics=("parallel",),   # shard batch tiles across TCs (v7x)
        ),
    )(x, w_enc, b_enc, w_heads, b_heads)

    # Single small (n, 2*latent) result -> cheap split, no padded-slab re-read.
    mu = out[:, :latent_dim]
    log_var = out[:, latent_dim:]
    prob = 0
    return [mu, log_var], prob


def init_params(key, input_size, hidden_dim, latent_dim, dtype=jnp.float32):
    """Torch-Linear-style init U(-1/sqrt(fan_in), 1/sqrt(fan_in)).

    Weights stored transposed (in, out) and laid out for the kernel:
      - hidden dim zero-padded up to 128 lanes (weights are tiny and resident),
      - fc_mu / fc_var fused into one (hidden_pad, 2*latent) weight / bias,
        with NO lane padding on the output dimension.
    Zero padding of the hidden dim keeps the math identical.
    Pass dtype=jnp.bfloat16 to halve the x / weight HBM read streams on
    v6e/v7x (biases, accumulation and elementwise stay f32; note bf16 results
    deviate from the f32 torch reference beyond ~1e-5)."""
    def linear(k, fan_in, fan_out):
        kw, kb = jax.random.split(k)
        bound = 1.0 / jnp.sqrt(fan_in)
        w = jax.random.uniform(kw, (fan_in, fan_out), jnp.float32, -bound, bound)
        b = jax.random.uniform(kb, (1, fan_out), jnp.float32, -bound, bound)
        return w, b

    k1, k2, k3 = jax.random.split(key, 3)
    w_enc, b_enc = linear(k1, input_size, hidden_dim)
    w_mu, b_mu = linear(k2, hidden_dim, latent_dim)
    w_var, b_var = linear(k3, hidden_dim, latent_dim)

    hp = _round_up(hidden_dim, _LANE)
    lo = 2 * latent_dim

    w_enc_p = jnp.zeros((input_size, hp), jnp.float32).at[:, :hidden_dim].set(w_enc)
    b_enc_p = jnp.zeros((1, hp), jnp.float32).at[:, :hidden_dim].set(b_enc)

    w_heads = jnp.zeros((hp, lo), jnp.float32)
    w_heads = w_heads.at[:hidden_dim, :latent_dim].set(w_mu)
    w_heads = w_heads.at[:hidden_dim, latent_dim:].set(w_var)
    b_heads = jnp.concatenate([b_mu, b_var], axis=1)

    return dict(
        w_enc=w_enc_p.astype(dtype), b_enc=b_enc_p,           # biases stay f32
        w_heads=w_heads.astype(dtype), b_heads=b_heads,
        latent_dim=latent_dim, hidden_dim=hidden_dim,
        # unpadded f32 tensors kept only for the pure-JAX reference check
        _ref=dict(w_enc=w_enc, b_enc=b_enc, w_mu=w_mu, b_mu=b_mu,
                  w_var=w_var, b_var=b_var),
    )


def vae_forward_ref(x, p):
    h = x @ p["w_enc"] + p["b_enc"]
    h = jnp.where(h > 0, h, 0.01 * h)
    return h @ p["w_mu"] + p["b_mu"], h @ p["w_var"] + p["b_var"]


if __name__ == "__main__":
    # Small shapes consistent with the module defaults (hidden_dims=[100]).
    # batch=20 deliberately not a multiple of the row tile: exercises the
    # ragged (masked) last output block and the >=2-step grid split.
    batch, input_size, hidden_dim, latent_dim = 20, 32, 100, 16

    key = jax.random.PRNGKey(0)
    kx, kp = jax.random.split(key)
    x = jax.random.normal(kx, (batch, input_size), jnp.float32)
    params = init_params(kp, input_size, hidden_dim, latent_dim)

    (mu, log_var), prob = vae_forward(x, params)
    jax.block_until_ready((mu, log_var))

    # correctness check vs pure-JAX reference (unpadded, unfused weights)
    mu_ref, lv_ref = vae_forward_ref(x, params["_ref"])
    assert mu.shape == (batch, latent_dim) and log_var.shape == (batch, latent_dim)
    assert jnp.allclose(mu, mu_ref, atol=1e-5, rtol=1e-5)
    assert jnp.allclose(log_var, lv_ref, atol=1e-5, rtol=1e-5)
    assert prob == 0

    # TODO(synk): `inverse` hardcodes a (-1, 512, 2, 2) view inconsistent with the
    # Linear-only decoder in this config; only forward() is implemented here.
    print("KERNEL_OK")
</pallas_src>

<mosaic_0001>
module attributes {stable_mosaic.version = 11 : i64} {
  func.func @_vae_encode_kernel(%arg0: i32, %arg1: memref<16x32xf32, #tpu.memory_space<vmem>>, %arg2: memref<32x128xf32, #tpu.memory_space<vmem>>, %arg3: memref<1x128xf32, #tpu.memory_space<vmem>>, %arg4: memref<128x32xf32, #tpu.memory_space<vmem>>, %arg5: memref<1x32xf32, #tpu.memory_space<vmem>>, %arg6: memref<16x32xf32, #tpu.memory_space<vmem>>) attributes {dimension_semantics = [#tpu.dimension_semantics<parallel>], iteration_bounds = array<i64: 2>, scalar_prefetch = 0 : i64, scratch_operands = 0 : i64, tpu.core_type = #tpu.core_type<tc>, window_params = [{transform_indices = @transform_0, window_bounds = array<i64: 16, 32>}, {pipeline_mode = #tpu.pipeline_mode<synchronous>, transform_indices = @transform_1, window_bounds = array<i64: 32, 128>}, {pipeline_mode = #tpu.pipeline_mode<synchronous>, transform_indices = @transform_2, window_bounds = array<i64: 1, 128>}, {pipeline_mode = #tpu.pipeline_mode<synchronous>, transform_indices = @transform_3, window_bounds = array<i64: 128, 32>}, {pipeline_mode = #tpu.pipeline_mode<synchronous>, transform_indices = @transform_4, window_bounds = array<i64: 1, 32>}, {transform_indices = @transform_5, window_bounds = array<i64: 16, 32>}]} {
    %c0 = arith.constant 0 : index
    %c0_0 = arith.constant 0 : index
    %0 = vector.load %arg1[%c0, %c0_0] : memref<16x32xf32, #tpu.memory_space<vmem>>, vector<16x32xf32>
    %c0_1 = arith.constant 0 : index
    %c0_2 = arith.constant 0 : index
    %1 = vector.load %arg2[%c0_1, %c0_2] : memref<32x128xf32, #tpu.memory_space<vmem>>, vector<32x128xf32>
    %cst = arith.constant dense<0.000000e+00> : vector<16x128xf32>
    %2 = tpu.matmul %0, %1, %cst {dimension_numbers = #tpu.dot_dimension_numbers<[1], [0], [0], [1], [0, 0, 1, 1], [], []>} : vector<16x32xf32>, vector<32x128xf32>, vector<16x128xf32> -> vector<16x128xf32>
    %c0_3 = arith.constant 0 : index
    %c0_4 = arith.constant 0 : index
    %3 = vector.load %arg3[%c0_3, %c0_4] : memref<1x128xf32, #tpu.memory_space<vmem>>, vector<1x128xf32>
    %4 = vector.broadcast %3 : vector<1x128xf32> to vector<16x128xf32>
    %5 = arith.addf %2, %4 : vector<16x128xf32>
    %cst_5 = arith.constant 0.000000e+00 : f32
    %6 = vector.broadcast %cst_5 : f32 to vector<16x128xf32>
    %7 = arith.cmpf ogt, %5, %6 : vector<16x128xf32>
    %cst_6 = arith.constant 0.00999999977 : f32
    %8 = vector.broadcast %cst_6 : f32 to vector<16x128xf32>
    %9 = arith.mulf %8, %5 : vector<16x128xf32>
    %10 = arith.select %7, %5, %9 : vector<16x128xi1>, vector<16x128xf32>
    %c0_7 = arith.constant 0 : index
    %c0_8 = arith.constant 0 : index
    %11 = vector.load %arg4[%c0_7, %c0_8] : memref<128x32xf32, #tpu.memory_space<vmem>>, vector<128x32xf32>
    %cst_9 = arith.constant dense<0.000000e+00> : vector<16x32xf32>
    %12 = tpu.matmul %10, %11, %cst_9 {dimension_numbers = #tpu.dot_dimension_numbers<[1], [0], [0], [1], [0, 0, 1, 1], [], []>} : vector<16x128xf32>, vector<128x32xf32>, vector<16x32xf32> -> vector<16x32xf32>
    %c0_10 = arith.constant 0 : index
    %c0_11 = arith.constant 0 : index
    %13 = vector.load %arg5[%c0_10, %c0_11] : memref<1x32xf32, #tpu.memory_space<vmem>>, vector<1x32xf32>
    %14 = vector.broadcast %13 : vector<1x32xf32> to vector<16x32xf32>
    %15 = arith.addf %12, %14 : vector<16x32xf32>
    %c0_12 = arith.constant 0 : index
    %c0_13 = arith.constant 0 : index
    %16 = vector.load %arg6[%c0_12, %c0_13] : memref<16x32xf32, #tpu.memory_space<vmem>>, vector<16x32xf32>
    tpu.vector_store %arg6[%c0_12, %c0_13], %15 {strides = array<i32>} : memref<16x32xf32, #tpu.memory_space<vmem>>, vector<16x32xf32>,
    return
  }
  func.func @transform_0(%arg0: i32) -> (i32, i32) {
    %c0_i32 = arith.constant 0 : i32
    %c0_i32_0 = arith.constant 0 : i32
    return %arg0, %c0_i32 : i32, i32
  }
  func.func @transform_1(%arg0: i32) -> (i32, i32) {
    %c0_i32 = arith.constant 0 : i32
    %c0_i32_0 = arith.constant 0 : i32
    %c0_i32_1 = arith.constant 0 : i32
    return %c0_i32, %c0_i32_0 : i32, i32
  }
  func.func @transform_2(%arg0: i32) -> (i32, i32) {
    %c0_i32 = arith.constant 0 : i32
    %c0_i32_0 = arith.constant 0 : i32
    %c0_i32_1 = arith.constant 0 : i32
    return %c0_i32, %c0_i32_0 : i32, i32
  }
  func.func @transform_3(%arg0: i32) -> (i32, i32) {
    %c0_i32 = arith.constant 0 : i32
    %c0_i32_0 = arith.constant 0 : i32
    %c0_i32_1 = arith.constant 0 : i32
    return %c0_i32, %c0_i32_0 : i32, i32
  }
  func.func @transform_4(%arg0: i32) -> (i32, i32) {
    %c0_i32 = arith.constant 0 : i32
    %c0_i32_0 = arith.constant 0 : i32
    %c0_i32_1 = arith.constant 0 : i32
    return %c0_i32, %c0_i32_0 : i32, i32
  }
  func.func @transform_5(%arg0: i32) -> (i32, i32) {
    %c0_i32 = arith.constant 0 : i32
    %c0_i32_0 = arith.constant 0 : i32
    return %arg0, %c0_i32 : i32, i32
  }
}

</mosaic_0001>

<llo_original>
// kernel: tpu_custom_call.1
$region0: #{tpu_custom_call.1}
  #allocation0 [shape = 'u32[]', space=smem, size = 0x4, offset = 0x4, fixed_abs, tag = 'smem constant byte address 0x4 - core index']
  #allocation1 [shape = 'u32[144,128]{1,0:T(1,128)}', space=vmem, size = 0x12000, scoped, tag = 'internal scratch']
  %s0 = inlined_call_operand.vmem [shape: f32[20,32], index: 0, kind: input, shape index: {}]
  %s1 = inlined_call_operand.vmem [shape: f32[32,128], index: 1, kind: input, shape index: {}]
  %s2 = inlined_call_operand.vmem [shape: f32[1,128], index: 2, kind: input, shape index: {}]
  %s3 = inlined_call_operand.vmem [shape: f32[128,32], index: 3, kind: input, shape index: {}]
  %s4 = inlined_call_operand.vmem [shape: f32[1,32], index: 4, kind: input, shape index: {}]
  %s5 = inlined_call_operand.hbm [shape: f32[20,32], index: 5, kind: output, shape index: {}]
  %s6 = sld [smem:[#allocation0]]
  $region53: #{tpu_custom_call.1} parent=0
    _
  %s8 = ssub.s32 1, %s6
  %s9 = scalar_select 0, %s8, %s6
  $region1: #{tpu_custom_call.1} parent=0
    #allocation2 [shape = 'u8[16384]{0}', space=vmem, size = 0x4000, scoped, tag = 'output window, operand 0']
    #allocation3 [shape = 's32[2]{0}', space=sflag, size = 0x8, scoped, tag = 'scoped memory for tpu_custom_call.1']
    %10 = vsyncpa [#allocation3], 0
    %s11 = scalar_lea.sflag [#allocation3], 1
    %12 = vsyncpa %s11, 0
    loop: start=0, step=1, limit=4
    $region2: #{tpu_custom_call.1} parent=1 // loop_pre_header
      _
    $region3: #{tpu_custom_call.1} parent=1 // loop_header
      %s14 = sphi 0, %s18
      %p15 = scmp.ge.s32.totalorder %s14, 4
      %s24 = sphi 0, %s26
      %s27 = sphi 0, %s24
      %s28 = sphi 0, %s27
      %s44 = sphi 0, %s28
      %s48 = sphi 0, %s48
      %s50 = sphi 0, %s48
      %s51 = sphi 0, %s50
      %s65 = sphi 0, %s51
      %s69 = sphi 0, %s69
      %s71 = sphi 0, %s69
      %s72 = sphi 0, %s71
      %s86 = sphi 0, %s72
      %s90 = sphi 0, %s90
      %s92 = sphi 0, %s90
      %s93 = sphi 0, %s92
      %s107 = sphi 0, %s93
      %s111 = sphi 0, %s111
      %s113 = sphi 0, %s111
      %s114 = sphi 0, %s113
      %s128 = sphi 0, %s114
      %s134 = sphi 0, %s136
      %s137 = sphi 0, %s134
      %s138 = sphi 0, %s137
      %s154 = sphi 0, %s138
    $region4: #{tpu_custom_call.1} parent=1 // loop_header_branch
      %17 = sbr.rel (%p15) target = $region8
    $region5: #{tpu_custom_call.1} parent=1 // loop_body
      %s19 = ssub.s32 %s14, 1
      %s20 = ssub.s32 %s14, 2
      %s21 = sadd.s32 %s14, 1
      %s22 = ssub.s32 %s14, %s21
      %p23 = scmp.eq.s32.totalorder %s22, 0
      %s25 = sadd.s32 %s24, 1
      %s26 = scalar_select %p23, %s24, %s25
      %p29 = pneg %p23
      %p30 = scmp.eq.s32.totalorder %s14, 1
      %p31 = por %p29, %p30
      %p32 = scmp.ne.s32.totalorder %s24, %s27
      %p33 = scmp.eq.s32.totalorder %s14, 0
      %p34 = por %p32, %p33
      %p35 = scmp.ne.s32.totalorder %s24, %s27
      %p36 = scmp.eq.s32.totalorder %s19, 1
      %p37 = por %p35, %p36
      %p38 = scmp.ne.s32.totalorder %s27, %s28
      %p39 = scmp.eq.s32.totalorder %s19, 0
      %p40 = por %p38, %p39
      %p41 = scmp.ne.s32.totalorder %s27, %s28
      %p42 = scmp.eq.s32.totalorder %s20, 1
      %p43 = por %p41, %p42
      %p45 = scmp.ne.s32.totalorder %s28, %s44
      %p46 = scmp.eq.s32.totalorder %s20, 0
      %p47 = por %p45, %p46
      %s49 = sadd.s32 %s48, 1
      %p52 = scmp.eq.s32.totalorder %s14, 1
      %p53 = scmp.ne.s32.totalorder %s48, %s50
      %p54 = scmp.eq.s32.totalorder %s14, 0
      %p55 = por %p53, %p54
      %p56 = scmp.ne.s32.totalorder %s48, %s50
      %p57 = scmp.eq.s32.totalorder %s19, 1
      %p58 = por %p56, %p57
      %p59 = scmp.ne.s32.totalorder %s50, %s51
      %p60 = scmp.eq.s32.totalorder %s19, 0
      %p61 = por %p59, %p60
      %p62 = scmp.ne.s32.totalorder %s50, %s51
      %p63 = scmp.eq.s32.totalorder %s20, 1
      %p64 = por %p62, %p63
      %p66 = scmp.ne.s32.totalorder %s51, %s65
      %p67 = scmp.eq.s32.totalorder %s20, 0
      %p68 = por %p66, %p67
      %s70 = sadd.s32 %s69, 1
      %p73 = scmp.eq.s32.totalorder %s14, 1
      %p74 = scmp.ne.s32.totalorder %s69, %s71
      %p75 = scmp.eq.s32.totalorder %s14, 0
      %p76 = por %p74, %p75
      %p77 = scmp.ne.s32.totalorder %s69, %s71
      %p78 = scmp.eq.s32.totalorder %s19, 1
      %p79 = por %p77, %p78
      %p80 = scmp.ne.s32.totalorder %s71, %s72
      %p81 = scmp.eq.s32.totalorder %s19, 0
      %p82 = por %p80, %p81
      %p83 = scmp.ne.s32.totalorder %s71, %s72
      %p84 = scmp.eq.s32.totalorder %s20, 1
      %p85 = por %p83, %p84
      %p87 = scmp.ne.s32.totalorder %s72, %s86
      %p88 = scmp.eq.s32.totalorder %s20, 0
      %p89 = por %p87, %p88
      %s91 = sadd.s32 %s90, 1
      %p94 = scmp.eq.s32.totalorder %s14, 1
      %p95 = scmp.ne.s32.totalorder %s90, %s92
      %p96 = scmp.eq.s32.totalorder %s14, 0
      %p97 = por %p95, %p96
      %p98 = scmp.ne.s32.totalorder %s90, %s92
      %p99 = scmp.eq.s32.totalorder %s19, 1
      %p100 = por %p98, %p99
      %p101 = scmp.ne.s32.totalorder %s92, %s93
      %p102 = scmp.eq.s32.totalorder %s19, 0
      %p103 = por %p101, %p102
      %p104 = scmp.ne.s32.totalorder %s92, %s93
      %p105 = scmp.eq.s32.totalorder %s20, 1
      %p106 = por %p104, %p105
      %p108 = scmp.ne.s32.totalorder %s93, %s107
      %p109 = scmp.eq.s32.totalorder %s20, 0
      %p110 = por %p108, %p109
      %s112 = sadd.s32 %s111, 1
      %p115 = scmp.eq.s32.totalorder %s14, 1
      %p116 = scmp.ne.s32.totalorder %s111, %s113
      %p117 = scmp.eq.s32.totalorder %s14, 0
      %p118 = por %p116, %p117
      %p119 = scmp.ne.s32.totalorder %s111, %s113
      %p120 = scmp.eq.s32.totalorder %s19, 1
      %p121 = por %p119, %p120
      %p122 = scmp.ne.s32.totalorder %s113, %s114
      %p123 = scmp.eq.s32.totalorder %s19, 0
      %p124 = por %p122, %p123
      %p125 = scmp.ne.s32.totalorder %s113, %s114
      %p126 = scmp.eq.s32.totalorder %s20, 1
      %p127 = por %p125, %p126
      %p129 = scmp.ne.s32.totalorder %s114, %s128
      %p130 = scmp.eq.s32.totalorder %s20, 0
      %p131 = por %p129, %p130
      %s132 = ssub.s32 %s14, %s21
      %p133 = scmp.eq.s32.totalorder %s132, 0
      %s135 = sadd.s32 %s134, 1
      %s136 = scalar_select %p133, %s134, %s135
      %p139 = pneg %p133
      %p140 = scmp.eq.s32.totalorder %s14, 1
      %p141 = por %p139, %p140
      %p142 = scmp.ne.s32.totalorder %s134, %s137
      %p143 = scmp.eq.s32.totalorder %s14, 0
      %p144 = por %p142, %p143
      %p145 = scmp.ne.s32.totalorder %s134, %s137
      %p146 = scmp.eq.s32.totalorder %s19, 1
      %p147 = por %p145, %p146
      %p148 = scmp.ne.s32.totalorder %s137, %s138
      %p149 = scmp.eq.s32.totalorder %s19, 0
      %p150 = por %p148, %p149
      %p151 = scmp.ne.s32.totalorder %s137, %s138
      %p152 = scmp.eq.s32.totalorder %s20, 1
      %p153 = por %p151, %p152
      %p155 = scmp.ne.s32.totalorder %s138, %s154
      %p156 = scmp.eq.s32.totalorder %s20, 0
      %p157 = por %p155, %p156
      %p158 = scmp.le.s32.totalorder 1, %s14
      %p159 = scmp.lt.s32.totalorder %s14, 3
      %p160 = pnand %p158, %p159
      %p161 = pneg %p160
      // Predicated region
      $region9: #{tpu_custom_call.1} parent=5 // pred_check
        _
      $region10: #{tpu_custom_call.1} parent=5 // pred_check_branch
        %163 = sbr.rel (%p160) target = $region12
      $region11: #{tpu_custom_call.1} parent=5 // pred_region
        %s164 = ssub.s32 %s14, 1
        // Predicated region
        $region13: #{tpu_custom_call.1} parent=11 // pred_check
          %p165 = pneg %p61
        $region14: #{tpu_custom_call.1} parent=11 // pred_check_branch
          %167 = sbr.rel (%p165) target = $region16
        $region15: #{tpu_custom_call.1} parent=11 // pred_region
          _
        $region16: #{tpu_custom_call.1} parent=11 // pred_fallthru
          _
        // Predicated region
        $region17: #{tpu_custom_call.1} parent=11 // pred_check
          %p168 = pneg %p82
        $region18: #{tpu_custom_call.1} parent=11 // pred_check_branch
          %170 = sbr.rel (%p168) target = $region20
        $region19: #{tpu_custom_call.1} parent=11 // pred_region
          _
        $region20: #{tpu_custom_call.1} parent=11 // pred_fallthru
          _
        // Predicated region
        $region21: #{tpu_custom_call.1} parent=11 // pred_check
          %p171 = pneg %p103
        $region22: #{tpu_custom_call.1} parent=11 // pred_check_branch
          %173 = sbr.rel (%p171) target = $region24
        $region23: #{tpu_custom_call.1} parent=11 // pred_region
          _
        $region24: #{tpu_custom_call.1} parent=11 // pred_fallthru
          _
        // Predicated region
        $region25: #{tpu_custom_call.1} parent=11 // pred_check
          %p174 = pneg %p124
        $region26: #{tpu_custom_call.1} parent=11 // pred_check_branch
          %176 = sbr.rel (%p174) target = $region28
        $region27: #{tpu_custom_call.1} parent=11 // pred_region
          _
        $region28: #{tpu_custom_call.1} parent=11 // pred_fallthru
          _
      $region12: #{tpu_custom_call.1} parent=5 // pred_fallthru
        _
      %p177 = scmp.lt.s32.totalorder %s14, 2
      // Predicated region
      $region29: #{tpu_custom_call.1} parent=5 // pred_check
        %p178 = pneg %p177
      $region30: #{tpu_custom_call.1} parent=5 // pred_check_branch
        %180 = sbr.rel (%p178) target = $region32
      $region31: #{tpu_custom_call.1} parent=5 // pred_region
        // Predicated region
        $region33: #{tpu_custom_call.1} parent=31 // pred_check
          %p181 = pneg %p34
        $region34: #{tpu_custom_call.1} parent=31 // pred_check_branch
          %183 = sbr.rel (%p181) target = $region36
        $region35: #{tpu_custom_call.1} parent=31 // pred_region
          %s184 = smul.u32 2, %s14
          %s185 = ssub.s32 3, %s184
          %p186 = scmp.lt.s32.totalorder %s185, 2
          %s187 = scalar_select %p186, %s185, 2
          %s188 = smul.u32 128, %s187
          %p189 = scmp.lt.s32.totalorder %s184, 2
          %s190 = scalar_select %p189, %s184, 2
          %s191 = smul.addr %s190, 8
          %s192 = scalar_lea.vmem %s0, %s191
          %s193 = smul.u32 2, %s14
          %s194 = ssub.s32 3, %s193
          %p195 = scmp.lt.s32.totalorder %s194, 2
          %s196 = scalar_select %p195, %s194, 2
          %s197 = smul.u32 128, %s196
        $region36: #{tpu_custom_call.1} parent=31 // pred_fallthru
          _
      $region32: #{tpu_custom_call.1} parent=5 // pred_fallthru
        _
      %p198 = scmp.le.s32.totalorder 1, %s14
      %p199 = scmp.lt.s32.totalorder %s14, 3
      %p200 = pnand %p198, %p199
      %p201 = pneg %p200
      // Predicated region
      $region37: #{tpu_custom_call.1} parent=5 // pred_check
        _
      $region38: #{tpu_custom_call.1} parent=5 // pred_check_branch
        %203 = sbr.rel (%p200) target = $region40
      $region39: #{tpu_custom_call.1} parent=5 // pred_region
        %s204 = ssub.s32 %s14, 1
        %s205 = smul.u32 2, %s19
        %s206 = ssub.s32 3, %s205
        %p207 = scmp.lt.s32.totalorder %s206, 2
        %s208 = scalar_select %p207, %s206, 2
        %s209 = smul.u32 128, %s208
        %p210 = scmp.lt.s32.totalorder %s205, 2
        %s211 = scalar_select %p210, %s205, 2
        %s212 = smul.addr %s211, 8
        %s213 = scalar_lea.vmem %s0, %s212
        %p214 = pneg %p40
        %p215 = pneg %p37
        %p216 = pneg %p61
        %p217 = pneg %p58
        %p218 = pneg %p82
        %p219 = pneg %p79
        %p220 = pneg %p103
        %p221 = pneg %p100
        %p222 = pneg %p124
        %p223 = pneg %p121
        %p224 = pneg %p150
        %p225 = pneg %p147
        %s226 = sand.u32 %s137, 1
        %s227 = scalar_lea.sflag [#allocation3], %s226
        %s228 = sand.u32 %s137, 1
        %s229 = smul.addr %s228, 16
        %s230 = scalar_lea.vmem [#allocation2], %s229
        %s231 = smul.u32 2, %s19
        %s232 = ssub.s32 3, %s231
        %p233 = scmp.lt.s32.totalorder %s232, 2
        %s234 = scalar_select %p233, %s232, 2
        %s235 = smul.u32 128, %s234
        %p236 = scmp.lt.s32.totalorder %s231, 2
        %s237 = scalar_select %p236, %s231, 2
        %s238 = smul.addr %s237, 8
        %s239 = scalar_lea.vmem %s0, %s238
        %s240 = smul.u32 2, %s19
        %s241 = ssub.s32 3, %s240
        %p242 = scmp.lt.s32.totalorder %s241, 2
        %s243 = scalar_select %p242, %s241, 2
        %s244 = smul.u32 128, %s243
        %s245 = smul.u32 2, %s19
        %s246 = ssub.s32 3, %s245
        %p247 = scmp.lt.s32.totalorder %s246, 2
        %s248 = scalar_select %p247, %s246, 2
        %s249 = smul.u32 128, %s248
        %v250 = vld [vmem:[%s239] sm:$0xff]
        %v251 = vld [vmem:[%s239 + $0x8] sm:$0xff]
        %v252 = vld [vmem:[%s1] sm:$0xff]
        %v253 = vld [vmem:[%s1 + $0x8] sm:$0xff]
        %v254 = vld [vmem:[%s1 + $0x10] sm:$0xff]
        %v255 = vld [vmem:[%s1 + $0x18] sm:$0xff]
        %v256 = vld [vmem:[%s2] sm:$0x1]
        %v258 = vlaneseq
        %v259 = vshrl.u32 %v258, 7
        %v260 = vsub.s32 0, %v259
        %v261 = vrot.slane %v256, %v260
        %vm263 = vcmask 261120
        %v265 = vsel %vm263, %v250, 0
        %v268 = vsel %vm263, %v251, 0
        %270 = vmatprep.subr.mxu0 0.0
        %271 = vmatpush1.msra.mxu0 %v252
        %272 = vmatprep.subr.mxu0 0.0
        %273 = vmatpush1.msra.mxu0 %v253
        %274 = vmatprep.subr.mxu0 0.0
        %275 = vmatpush1.msra.mxu0 %v254
        %276 = vmatprep.subr.mxu0 0.0
        %277 = vmatpush1.msra.mxu0 %v255
        %278 = vmatprep.subr.mxu0 0.0
        %279 = vmatpush1.msra.mxu0 0.0
        %280 = vmatprep.subr.mxu0 0.0
        %281 = vmatpush1.msra.mxu0 0.0
        %282 = vmatprep.subr.mxu0 0.0
        %283 = vmatpush1.msra.mxu0 0.0
        %284 = vmatprep.subr.mxu0 0.0
        %285 = vmatpush1.msra.mxu0 0.0
        %286 = vmatprep.subr.mxu0 0.0
        %287 = vmatpush1.msra.mxu0 0.0
        %288 = vmatprep.subr.mxu0 0.0
        %289 = vmatpush1.msra.mxu0 0.0
        %290 = vmatprep.subr.mxu0 0.0
        %291 = vmatpush1.msra.mxu0 0.0
        %292 = vmatprep.subr.mxu0 0.0
        %293 = vmatpush1.msra.mxu0 0.0
        %294 = vmatprep.subr.mxu0 0.0
        %295 = vmatpush1.msra.mxu0 0.0
        %296 = vmatprep.subr.mxu0 0.0
        %297 = vmatpush1.msra.mxu0 0.0
        %298 = vmatprep.subr.mxu0 0.0
        %299 = vmatpush1.msra.mxu0 0.0
        %300 = vmatprep.subr.mxu0 0.0
        %301 = vmatpush1.msra.mxu0 0.0
        %302 = vmatprep.subr.mxu0 0.0
        %303 = vmatpush1.msra.mxu0 0.0
        %304 = vmatprep.subr.mxu0 0.0
        %305 = vmatpush1.msra.mxu0 0.0
        %306 = vmatprep.subr.mxu0 0.0
        %307 = vmatpush1.msra.mxu0 0.0
        %308 = vmatprep.subr.mxu0 0.0
        %309 = vmatpush1.msra.mxu0 0.0
        %310 = vmatprep.subr.mxu0 0.0
        %311 = vmatpush1.msra.mxu0 0.0
        %312 = vmatprep.subr.mxu0 0.0
        %313 = vmatpush1.msra.mxu0 0.0
        %314 = vmatprep.subr.mxu0 0.0
        %315 = vmatpush1.msra.mxu0 0.0
        %316 = vmatprep.subr.mxu0 0.0
        %317 = vmatpush1.msra.mxu0 0.0
        %318 = vmatprep.subr.mxu0 0.0
        %319 = vmatpush1.msra.mxu0 0.0
        %320 = vmatprep.subr.mxu0 0.0
        %321 = vmatpush1.msra.mxu0 0.0
        %322 = vmatprep.subr.mxu0 0.0
        %323 = vmatpush1.msra.mxu0 0.0
        %324 = vmatprep.subr.mxu0 0.0
        %325 = vmatpush1.msra.mxu0 0.0
        %326 = vmatprep.subr.mxu0 0.0
        %327 = vmatpush1.msra.mxu0 0.0
        %328 = vmatprep.subr.mxu0 0.0
        %329 = vmatpush1.msra.mxu0 0.0
        %330 = vmatprep.subr.mxu0 0.0
        %331 = vmatpush1.msra.mxu0 0.0
        %332 = vmatprep.subr.mxu0 0.0
        %333 = vmatpush1.msra.mxu0 0.0
        %334 = vmatprep.mubr.f32.mxu0 0.0
        %335 = vmatmul.mubr.f32.gmra.mrb[0].mxu0 %v265
        %v336 = vpop.f32.mrb[0].mxu0
        %v337 = vadd.f32 %v261, %v336
        %v338 = vpop.f32.mrb[0].mxu0
        %339 = vmatprep.mubr.f32.mxu0 0.0
        %340 = vmatmul.mubr.f32.gmra.mrb[0].mxu0 %v268
        %v341 = vpop.f32.mrb[0].mxu0
        %v342 = vadd.f32 %v261, %v341
        %v343 = vpop.f32.mrb[0].mxu0
        %344 = vdwg.mxu0
        %vm345 = vcmp.gt.f32.partialorder %v337, 0.0
        %vm346 = vcmp.gt.f32.partialorder %v342, 0.0
        %v347 = vmul.f32 %v337, 0.01
        %v348 = vmul.f32 %v342, 0.01
        %v349 = vsel %vm345, %v337, %v347
        %v350 = vsel %vm346, %v342, %v348
        %v351 = vld [vmem:[%s3] sm:$0xff]
        %v352 = vld [vmem:[%s3 + $0x8] sm:$0xff]
        %v353 = vld [vmem:[%s3 + $0x10] sm:$0xff]
        %v354 = vld [vmem:[%s3 + $0x18] sm:$0xff]
        %v355 = vld [vmem:[%s3 + $0x20] sm:$0xff]
        %v356 = vld [vmem:[%s3 + $0x28] sm:$0xff]
        %v357 = vld [vmem:[%s3 + $0x30] sm:$0xff]
        %v358 = vld [vmem:[%s3 + $0x38] sm:$0xff]
        %v359 = vld [vmem:[%s3 + $0x40] sm:$0xff]
        %v360 = vld [vmem:[%s3 + $0x48] sm:$0xff]
        %v361 = vld [vmem:[%s3 + $0x50] sm:$0xff]
        %v362 = vld [vmem:[%s3 + $0x58] sm:$0xff]
        %v363 = vld [vmem:[%s3 + $0x60] sm:$0xff]
        %v364 = vld [vmem:[%s3 + $0x68] sm:$0xff]
        %v365 = vld [vmem:[%s3 + $0x70] sm:$0xff]
        %v366 = vld [vmem:[%s3 + $0x78] sm:$0xff]
        %v367 = vld [vmem:[%s4] sm:$0x1]
        %v369 = vlaneseq
        %v370 = vshrl.u32 %v369, 7
        %v371 = vsub.s32 0, %v370
        %v372 = vrot.slane %v367, %v371
        %374 = vmatprep.subr.mxu0 0.0
        %375 = vmatpush1.msra.mxu0 %v351
        %376 = vmatprep.subr.mxu0 0.0
        %377 = vmatpush1.msra.mxu0 %v352
        %378 = vmatprep.subr.mxu0 0.0
        %379 = vmatpush1.msra.mxu0 %v353
        %380 = vmatprep.subr.mxu0 0.0
        %381 = vmatpush1.msra.mxu0 %v354
        %382 = vmatprep.subr.mxu0 0.0
        %383 = vmatpush1.msra.mxu0 %v355
        %384 = vmatprep.subr.mxu0 0.0
        %385 = vmatpush1.msra.mxu0 %v356
        %386 = vmatprep.subr.mxu0 0.0
        %387 = vmatpush1.msra.mxu0 %v357
        %388 = vmatprep.subr.mxu0 0.0
        %389 = vmatpush1.msra.mxu0 %v358
        %390 = vmatprep.subr.mxu0 0.0
        %391 = vmatpush1.msra.mxu0 %v359
        %392 = vmatprep.subr.mxu0 0.0
        %393 = vmatpush1.msra.mxu0 %v360
        %394 = vmatprep.subr.mxu0 0.0
        %395 = vmatpush1.msra.mxu0 %v361
        %396 = vmatprep.subr.mxu0 0.0
        %397 = vmatpush1.msra.mxu0 %v362
        %398 = vmatprep.subr.mxu0 0.0
        %399 = vmatpush1.msra.mxu0 %v363
        %400 = vmatprep.subr.mxu0 0.0
        %401 = vmatpush1.msra.mxu0 %v364
        %402 = vmatprep.subr.mxu0 0.0
        %403 = vmatpush1.msra.mxu0 %v365
        %404 = vmatprep.subr.mxu0 0.0
        %405 = vmatpush1.msra.mxu0 %v366
        %406 = vmatprep.subr.mxu0 0.0
        %407 = vmatpush1.msra.mxu0 0.0
        %408 = vmatprep.subr.mxu0 0.0
        %409 = vmatpush1.msra.mxu0 0.0
        %410 = vmatprep.subr.mxu0 0.0
        %411 = vmatpush1.msra.mxu0 0.0
        %412 = vmatprep.subr.mxu0 0.0
        %413 = vmatpush1.msra.mxu0 0.0
        %414 = vmatprep.subr.mxu0 0.0
        %415 = vmatpush1.msra.mxu0 0.0
        %416 = vmatprep.subr.mxu0 0.0
        %417 = vmatpush1.msra.mxu0 0.0
        %418 = vmatprep.subr.mxu0 0.0
        %419 = vmatpush1.msra.mxu0 0.0
        %420 = vmatprep.subr.mxu0 0.0
        %421 = vmatpush1.msra.mxu0 0.0
        %422 = vmatprep.subr.mxu0 0.0
        %423 = vmatpush1.msra.mxu0 0.0
        %424 = vmatprep.subr.mxu0 0.0
        %425 = vmatpush1.msra.mxu0 0.0
        %426 = vmatprep.subr.mxu0 0.0
        %427 = vmatpush1.msra.mxu0 0.0
        %428 = vmatprep.subr.mxu0 0.0
        %429 = vmatpush1.msra.mxu0 0.0
        %430 = vmatprep.subr.mxu0 0.0
        %431 = vmatpush1.msra.mxu0 0.0
        %432 = vmatprep.subr.mxu0 0.0
        %433 = vmatpush1.msra.mxu0 0.0
        %434 = vmatprep.subr.mxu0 0.0
        %435 = vmatpush1.msra.mxu0 0.0
        %436 = vmatprep.subr.mxu0 0.0
        %437 = vmatpush1.msra.mxu0 0.0
        %438 = vmatprep.mubr.f32.mxu0 0.0
        %439 = vmatmul.mubr.f32.gmra.mrb[0].mxu0 %v349
        %v440 = vpop.f32.mrb[0].mxu0
        %v441 = vadd.f32 %v372, %v440
        %v442 = vpop.f32.mrb[0].mxu0
        %443 = vmatprep.mubr.f32.mxu0 0.0
        %444 = vmatmul.mubr.f32.gmra.mrb[0].mxu0 %v350
        %v445 = vpop.f32.mrb[0].mxu0
        %v446 = vadd.f32 %v372, %v445
        %v447 = vpop.f32.mrb[0].mxu0
        %448 = vdwg.mxu0
        %449 = vst.msk [vmem:[%s230] sm:$0xff] %vm263, %v441
        %450 = vst.msk [vmem:[%s230 + $0x8] sm:$0xff] %vm263, %v446
        %s451 = sand.u32 %s137, 1
        %s452 = scalar_lea.sflag [#allocation3], %s451
        %s453 = sand.u32 %s137, 1
        %s454 = smul.addr %s453, 16
        %s455 = scalar_lea.vmem [#allocation2], %s454
        // Predicated region
        $region41: #{tpu_custom_call.1} parent=39 // pred_check
          %p456 = pneg %p147
        $region42: #{tpu_custom_call.1} parent=39 // pred_check_branch
          %458 = sbr.rel (%p456) target = $region44
        $region43: #{tpu_custom_call.1} parent=39 // pred_region
          %s459 = smul.u32 2, %s19
          %s460 = ssub.s32 3, %s459
          %p461 = scmp.lt.s32.totalorder %s460, 2
          %s462 = scalar_select %p461, %s460, 2
          %s463 = smul.u32 128, %s462
          %s465 = ssub.s32 256, %s463
          %466 = vsyncadd %s452, %s465
          %p467 = scmp.ne.s32.totalorder 0, %s463
          %s468 = smul.addr %s459, 128
          %s469 = scalar_lea.hbm %s5, %s468
          %s470 = smul.u32 8, %s462
          %s471 = sshll.u32 %s455, 4
          %s472 = int_to_ptr.vmem [resolvable:$true] %s471
          %s473 = sshll.u32 %s470, 4
          %477 = dma.vmem_to_hbm [thread:$0]  (%p467), %s472, %s473, %s469, %s452, 128, 128, 8
        $region44: #{tpu_custom_call.1} parent=39 // pred_fallthru
          _
      $region40: #{tpu_custom_call.1} parent=5 // pred_fallthru
        _
      %p478 = scmp.le.s32.totalorder 2, %s14
      // Predicated region
      $region45: #{tpu_custom_call.1} parent=5 // pred_check
        %p479 = pneg %p478
      $region46: #{tpu_custom_call.1} parent=5 // pred_check_branch
        %481 = sbr.rel (%p479) target = $region48
      $region47: #{tpu_custom_call.1} parent=5 // pred_region
        %s482 = ssub.s32 %s14, 2
        // Predicated region
        $region49: #{tpu_custom_call.1} parent=47 // pred_check
          %p483 = pneg %p153
        $region50: #{tpu_custom_call.1} parent=47 // pred_check_branch
          %485 = sbr.rel (%p483) target = $region52
        $region51: #{tpu_custom_call.1} parent=47 // pred_region
          %s486 = sand.u32 %s138, 1
          %s487 = scalar_lea.sflag [#allocation3], %s486
          %s488 = sand.u32 %s138, 1
          %s489 = smul.addr %s488, 16
          %s490 = scalar_lea.vmem [#allocation2], %s489
          %491 = dma.done %s487, 256
        $region52: #{tpu_custom_call.1} parent=47 // pred_fallthru
          _
      $region48: #{tpu_custom_call.1} parent=5 // pred_fallthru
        _
    $region6: #{tpu_custom_call.1} parent=1 // loop_footer
      %s18 = sadd.s32 1, %s14
    $region7: #{tpu_custom_call.1} parent=1 // loop_footer_branch
      %13 = sbr.rel target = $region3
    $region8: #{tpu_custom_call.1} parent=1 // loop_exit
      _
    %492 = vsyncpa [#allocation3], 1
    %s493 = scalar_lea.sflag [#allocation3], 1
    %494 = vsyncpa %s493, 1

</llo_original>
